<compile_context>
chip_gen: v7x
topology: tpu7x:2x2x1
jax: 0.10.0
libtpu: 0.0.40
codegen_flags: <defaults>
</compile_context>

<pallas_src>
import functools

import jax
import jax.numpy as jnp
from jax.experimental import pallas as pl
from jax.experimental.pallas import tpu as pltpu

LANES = 128
MIN_GRID_STEPS = 8               # keep read/write DMA overlapped, feed both v7x TCs
MIN_BLOCK_BYTES = 256 * 1024     # don't shrink blocks below this when enforcing steps
SMALL_FALLBACK_BYTES = 512 * 1024  # below this, the fused XLA multiply is strictly faster


def _scale_kernel(gamma_ref, x_ref, o_ref):
    # gamma_ref: SMEM (1, 1) f32 scalar.  x_ref / o_ref: VMEM (tile_rows, width).
    g = gamma_ref[0, 0]
    if (x_ref.dtype == o_ref.dtype
            and jnp.issubdtype(o_ref.dtype, jnp.floating)
            and o_ref.dtype != jnp.float32):
        # e.g. bf16 in == bf16 out: multiply natively (halves vld/vst work on v6e/v7x).
        o_ref[...] = x_ref[...] * g.astype(o_ref.dtype)
    else:
        # Default path: compute in f32 (matches torch's f32 parameter promotion).
        # Note: integer-in/integer-out also takes this path (the reference module's
        # gamma is always a float parameter, so exact int semantics are not required).
        o_ref[...] = (x_ref[...].astype(jnp.float32) * g).astype(o_ref.dtype)


def _sublane_multiple(dtype) -> int:
    # Minimum sublane tile: 8 for 4-byte, 16 for 2-byte, 32 for 1-byte dtypes.
    itemsize = jnp.dtype(dtype).itemsize
    return max(8, 32 // max(1, itemsize))


def _pick_width(n: int) -> int:
    """Largest lane-dense width (multiple of 128) that evenly divides n,
    preferring widths that still leave >= 8 rows.  n must be a multiple of 128."""
    best = None
    for w in (2048, 1024, 512, 256, LANES):
        if n % w == 0:
            if best is None:
                best = w
            if n // w >= 8:
                return w
    return best


def _round_down(v: int, m: int) -> int:
    return (v // m) * m


@functools.lru_cache(maxsize=None)
def _generation_tuning():
    """Returns (combined in+out bytes per grid step, vmem_limit_bytes) for this chip."""
    try:
        vmem = pltpu.get_tpu_info().vmem_capacity_bytes
    except Exception:
        vmem = 64 * 1024 * 1024  # conservative default (v7x-sized VMEM)
    if vmem >= 96 * 1024 * 1024:
        # v5e / v6e: 128 MiB physical VMEM -> bigger blocks shave per-step overhead.
        return 16 * 1024 * 1024, 64 * 1024 * 1024
    # v7x: 64 MiB VMEM per TensorCore -> stay conservative (2 buffers x block fits).
    return 8 * 1024 * 1024, 32 * 1024 * 1024


def _scale_2d(x2d: jax.Array, gamma_f32: jax.Array, out_dtype) -> jax.Array:
    rows, width = x2d.shape
    target_block_bytes, vmem_limit = _generation_tuning()

    # Row-tile multiple: stricter of the input and output dtype layouts.
    s = max(_sublane_multiple(x2d.dtype), _sublane_multiple(out_dtype))
    bytes_per_row = width * (jnp.dtype(x2d.dtype).itemsize + jnp.dtype(out_dtype).itemsize)

    if rows <= s:
        tile_rows = rows  # single full-array block (tiny input; block == full dims is legal)
    else:
        # Target block sized for this generation's VMEM ...
        target_rows = max(s, _round_down(target_block_bytes // bytes_per_row, s))
        # ... but capped so the grid has >= MIN_GRID_STEPS steps (read/write DMA
        # overlap + v7x megacore sharding), never shrinking below MIN_BLOCK_BYTES.
        floor_rows = max(s, _round_down(MIN_BLOCK_BYTES // bytes_per_row, s))
        cap_rows = max(floor_rows, _round_down(rows // MIN_GRID_STEPS, s))
        tile_rows = min(target_rows, cap_rows)
        if tile_rows >= rows:
            tile_rows = rows
    grid = (pl.cdiv(rows, tile_rows),)  # Pallas masks the partial last block

    gamma_smem = jnp.asarray(gamma_f32, dtype=jnp.float32).reshape(1, 1)

    return pl.pallas_call(
        _scale_kernel,
        out_shape=jax.ShapeDtypeStruct((rows, width), out_dtype),
        grid=grid,
        in_specs=[
            pl.BlockSpec(memory_space=pltpu.SMEM),               # gamma scalar
            pl.BlockSpec((tile_rows, width), lambda i: (i, 0)),  # x slab
        ],
        out_specs=pl.BlockSpec((tile_rows, width), lambda i: (i, 0)),
        compiler_params=pltpu.CompilerParams(
            dimension_semantics=("parallel",),
            vmem_limit_bytes=vmem_limit,
        ),
    )(gamma_smem, x2d)


def scale_layer(x: jax.Array, gamma, *, min_pallas_bytes: int = SMALL_FALLBACK_BYTES) -> jax.Array:
    """Equivalent of ScaleLayer.forward: input * gamma (scalar broadcast).

    A Python-float / weakly-typed gamma is treated as the module's float32
    parameter (so bf16 inputs promote to f32, matching torch); an explicit
    jax.Array gamma keeps its dtype.
    """
    if isinstance(gamma, jax.Array):
        gamma_arr = jnp.reshape(gamma, ())
        if getattr(gamma_arr, "weak_type", False):
            gamma_arr = jnp.asarray(gamma_arr, dtype=jnp.float32)
    else:
        gamma_arr = jnp.asarray(gamma, dtype=jnp.float32).reshape(())

    out_dtype = jnp.result_type(x.dtype, gamma_arr.dtype)

    n = x.size
    x_bytes = n * jnp.dtype(x.dtype).itemsize

    # Fused XLA multiply for: empty / tiny tensors (custom-call dispatch overhead
    # and lost fusion dominate) and element counts not divisible by 128 (a
    # pad/concat fix-up would add a full extra HBM pass; the plain multiply is
    # already one read + one write).
    if n == 0 or x_bytes < min_pallas_bytes or n % LANES != 0:
        return (x * gamma_arr).astype(out_dtype)

    width = _pick_width(n)
    out2d = _scale_2d(x.reshape(n // width, width), gamma_arr, out_dtype)
    return out2d.reshape(x.shape)


if __name__ == "__main__":
    key = jax.random.PRNGKey(0)

    # Deterministic parameter init (matches ScaleLayer.__init__ default).
    gamma = jnp.array([0.001], dtype=jnp.float32)

    # Small NCHW-style input consistent with a conv feature map.
    x = jax.random.normal(key, (2, 4, 16, 16), dtype=jnp.float32)

    ref = x * gamma[0]

    # Default path (tiny tensor -> fused XLA multiply fallback).
    y_default = jax.block_until_ready(scale_layer(x, gamma))

    # Forced Pallas path (what large tensors take), exercised on the same input.
    y_pallas = jax.block_until_ready(scale_layer(x, gamma, min_pallas_bytes=0))

    for y in (y_default, y_pallas):
        assert y.shape == x.shape
        assert y.dtype == ref.dtype
        assert jnp.allclose(y, ref, atol=1e-6, rtol=1e-6)

    print("KERNEL_OK")
</pallas_src>

<mosaic_0001>
module attributes {stable_mosaic.version = 11 : i64} {
  func.func @_scale_kernel(%arg0: i32, %arg1: memref<1x1xf32, #tpu.memory_space<smem>>, %arg2: memref<8x256xf32, #tpu.memory_space<vmem>>, %arg3: memref<8x256xf32, #tpu.memory_space<vmem>>) attributes {dimension_semantics = [#tpu.dimension_semantics<parallel>], iteration_bounds = array<i64: 1>, scalar_prefetch = 0 : i64, scratch_operands = 0 : i64, tpu.core_type = #tpu.core_type<tc>, window_params = [{transform_indices = @transform_0, window_bounds = array<i64: 1, 1>}, {transform_indices = @transform_1, window_bounds = array<i64: 8, 256>}, {transform_indices = @transform_2, window_bounds = array<i64: 8, 256>}]} {
    %c0 = arith.constant 0 : index
    %c0_0 = arith.constant 0 : index
    %0 = memref.load %arg1[%c0, %c0_0] : memref<1x1xf32, #tpu.memory_space<smem>>
    %c0_1 = arith.constant 0 : index
    %c0_2 = arith.constant 0 : index
    %1 = vector.load %arg2[%c0_1, %c0_2] : memref<8x256xf32, #tpu.memory_space<vmem>>, vector<8x256xf32>
    %2 = vector.broadcast %0 : f32 to vector<8x256xf32>
    %3 = arith.mulf %1, %2 : vector<8x256xf32>
    %c0_3 = arith.constant 0 : index
    %c0_4 = arith.constant 0 : index
    %4 = vector.load %arg3[%c0_3, %c0_4] : memref<8x256xf32, #tpu.memory_space<vmem>>, vector<8x256xf32>
    tpu.vector_store %arg3[%c0_3, %c0_4], %3 {strides = array<i32>} : memref<8x256xf32, #tpu.memory_space<vmem>>, vector<8x256xf32>,
    return
  }
  func.func @transform_0(%arg0: i32) -> (i32, i32) {
    %c0_i32 = arith.constant 0 : i32
    %c0_i32_0 = arith.constant 0 : i32
    %c0_i32_1 = arith.constant 0 : i32
    return %c0_i32, %c0_i32_0 : i32, i32
  }
  func.func @transform_1(%arg0: i32) -> (i32, i32) {
    %c0_i32 = arith.constant 0 : i32
    %c0_i32_0 = arith.constant 0 : i32
    return %arg0, %c0_i32 : i32, i32
  }
  func.func @transform_2(%arg0: i32) -> (i32, i32) {
    %c0_i32 = arith.constant 0 : i32
    %c0_i32_0 = arith.constant 0 : i32
    return %arg0, %c0_i32 : i32, i32
  }
}

</mosaic_0001>

<llo_original>
// kernel: tpu_custom_call.1
$region0: #{tpu_custom_call.1}
  #allocation0 [shape = 'u32[]', space=smem, size = 0x4, offset = 0x4, fixed_abs, tag = 'smem constant byte address 0x4 - core index']
  #allocation1 [shape = 'u32[144,128]{1,0:T(1,128)}', space=vmem, size = 0x12000, scoped, tag = 'internal scratch']
  #allocation2 [shape = 'f32[1,1]{1,0:T(1,128)S(6)}', space=smem, size = 0x200, scoped, tag = 'scoped memory for tpu_custom_call.1']
  %s0 = inlined_call_operand.<no memory space> [shape: f32[1,1], index: 0, kind: input, shape index: {}]
  %s1 = inlined_call_operand.hbm [shape: f32[8,256], index: 1, kind: input, shape index: {}]
  %s2 = inlined_call_operand.hbm [shape: f32[8,256], index: 2, kind: output, shape index: {}]
  %s3 = sld [smem:[#allocation0]]
  $region22: #{tpu_custom_call.1} parent=0
    _
  %s5 = ssub.s32 1, %s3
  %s6 = scalar_select 0, %s5, %s3
  %7 = sst [smem:[#allocation2]] %s0
  $region1: #{tpu_custom_call.1} parent=0
    #allocation3 [shape = 'u8[8192]{0}', space=vmem, size = 0x2000, scoped, tag = 'input window, operand 1, single buffered']
    #allocation4 [shape = 's32[1]{0}', space=sflag, size = 0x4, scoped, tag = 'scoped memory for tpu_custom_call.1']
    #allocation5 [shape = 's32[1]{0}', space=sflag, size = 0x4, scoped, tag = 'scoped memory for tpu_custom_call.1']
    #allocation6 [shape = 'u8[8192]{0}', space=vmem, size = 0x2000, scoped, tag = 'output window, operand 0, single buffered']
    %8 = vsyncpa [#allocation4], 0
    %9 = vsyncpa [#allocation5], 0
    // Predicated region
    $region2: #{tpu_custom_call.1} parent=1 // pred_check
      _
    $region3: #{tpu_custom_call.1} parent=1 // pred_check_branch
      %11 = sbr.rel (0) target = $region5
    $region4: #{tpu_custom_call.1} parent=1 // pred_region
      _
    $region5: #{tpu_custom_call.1} parent=1 // pred_fallthru
      _
    // Predicated region
    $region6: #{tpu_custom_call.1} parent=1 // pred_check
      _
    $region7: #{tpu_custom_call.1} parent=1 // pred_check_branch
      %13 = sbr.rel (0) target = $region9
    $region8: #{tpu_custom_call.1} parent=1 // pred_region
      %s15 = ssub.s32 256, 256
      %16 = vsyncadd [#allocation4], %s15
      %s18 = sshll.u32 [#allocation3], 4
      %s19 = int_to_ptr.vmem [resolvable:$true] %s18
      %21 = dma.hbm_to_vmem [thread:$0]  %s1, 256, %s19, [#allocation4]
    $region9: #{tpu_custom_call.1} parent=1 // pred_fallthru
      _
    // Predicated region
    $region10: #{tpu_custom_call.1} parent=1 // pred_check
      _
    $region11: #{tpu_custom_call.1} parent=1 // pred_check_branch
      %23 = sbr.rel (0) target = $region13
    $region12: #{tpu_custom_call.1} parent=1 // pred_region
      %24 = dma.done [#allocation4], 256
    $region13: #{tpu_custom_call.1} parent=1 // pred_fallthru
      _
    %s25 = sld [smem:[#allocation2]]
    %v26 = vld [vmem:[#allocation3] sm:$0xff]
    %v27 = vld [vmem:[#allocation3 + $0x8] sm:$0xff]
    %v28 = vstv %s25
    %v29 = vmul.f32 %v26, %v28
    %v30 = vmul.f32 %v27, %v28
    %31 = vst [vmem:[#allocation6] sm:$0xff] %v29
    %32 = vst [vmem:[#allocation6 + $0x8] sm:$0xff] %v30
    // Predicated region
    $region14: #{tpu_custom_call.1} parent=1 // pred_check
      _
    $region15: #{tpu_custom_call.1} parent=1 // pred_check_branch
      %34 = sbr.rel (0) target = $region17
    $region16: #{tpu_custom_call.1} parent=1 // pred_region
      %s36 = ssub.s32 256, 256
      %37 = vsyncadd [#allocation5], %s36
      %s39 = sshll.u32 [#allocation6], 4
      %s40 = int_to_ptr.vmem [resolvable:$true] %s39
      %42 = dma.vmem_to_hbm [thread:$0]  %s40, 256, %s2, [#allocation5]
    $region17: #{tpu_custom_call.1} parent=1 // pred_fallthru
      _
    // Predicated region
    $region18: #{tpu_custom_call.1} parent=1 // pred_check
      _
    $region19: #{tpu_custom_call.1} parent=1 // pred_check_branch
      %44 = sbr.rel (0) target = $region21
    $region20: #{tpu_custom_call.1} parent=1 // pred_region
      %45 = dma.done [#allocation5], 256
    $region21: #{tpu_custom_call.1} parent=1 // pred_fallthru
      _
    %46 = vsyncpa [#allocation4], 1
    %47 = vsyncpa [#allocation5], 1

</llo_original>
